<compile_context>
chip_gen: v5e
topology: v5e:2x2
jax: 0.10.0
libtpu: 0.0.40
codegen_flags: <defaults>
</compile_context>

<pallas_src>
import jax
import jax.numpy as jnp
from jax.experimental import pallas as pl
from jax.experimental.pallas import tpu as pltpu

GAMMA = 2
EPS = 0.001
LANE = 128
SUBLANE = 8
TILE_ROWS_MAX = 4096          # 4096 x 128 f32 = 2 MiB per stream per step
CHUNK_ROWS = 512              # in-kernel sub-chunk (bounds VMEM temporaries)
VMEM_LIMIT_BYTES = 48 * 1024 * 1024   # < 64 MiB physical on v7x; >> actual need


def _make_focal_sum_kernel(*, tile_rows, chunk_rows, n_chunks, num_blocks,
                           valid_last_elems, binary_targets):
    """Builds a kernel that accumulates the UN-negated focal-loss sum into an
    (8,128) resident output block."""
    block_elems = tile_rows * LANE
    needs_mask = valid_last_elems < block_elems
    last_block = num_blocks - 1

    def chunk_loss(x, t):
        # x, t already float32.
        x = jnp.clip(x, EPS, 1.0 - EPS)
        if binary_targets:
            # t in {0,1}: one log per element instead of two.
            p = jnp.where(t > 0.5, x, 1.0 - x)
            q = 1.0 - p
            return (q * q) * jnp.log(p)
        omx = 1.0 - x
        a = (omx * omx) * jnp.log(x)      # gamma==2: explicit square (VPU)
        b = (x * x) * jnp.log(omx)
        return b + t * (a - b)            # == t*a + (1-t)*b, one fewer mul

    def kernel(x_ref, t_ref, o_ref):
        i = pl.program_id(0)

        @pl.when(i == 0)
        def _init():
            o_ref[...] = jnp.zeros_like(o_ref)

        def step(r0, masked):
            x = x_ref[pl.ds(r0, chunk_rows), :].astype(jnp.float32)
            t = t_ref[pl.ds(r0, chunk_rows), :].astype(jnp.float32)
            l = chunk_loss(x, t)
            if masked:
                row = jax.lax.broadcasted_iota(jnp.int32, (chunk_rows, LANE), 0)
                lane = jax.lax.broadcasted_iota(jnp.int32, (chunk_rows, LANE), 1)
                local = (r0 + row) * LANE + lane       # block-local flat index
                l = jnp.where(local < valid_last_elems, l, 0.0)
            # Fold the chunk to one (8,128) vreg with pure VPU adds and
            # accumulate into the resident output block.
            o_ref[...] += l.reshape(chunk_rows // SUBLANE, SUBLANE, LANE).sum(axis=0)

        def accumulate(masked):
            if n_chunks == 1:
                step(0, masked)
            else:
                def body(j, carry):
                    step(pl.multiple_of(j * chunk_rows, chunk_rows), masked)
                    return carry
                jax.lax.fori_loop(0, n_chunks, body, 0, unroll=n_chunks)

        if not needs_mask:
            accumulate(masked=False)
        else:
            if num_blocks > 1:
                @pl.when(i != last_block)
                def _full_blocks():
                    accumulate(masked=False)

            @pl.when(i == last_block)
            def _tail_block():
                accumulate(masked=True)

    return kernel


def focal_loss(inputs, targets, *, gamma=GAMMA, eps=EPS, binary_targets=False,
               tile_rows_max=TILE_ROWS_MAX):
    """Mean focal loss over all elements (matches the PyTorch FocalLoss module)."""
    # TODO(synk): gamma/eps are baked into the kernel constants (module defaults).
    assert gamma == GAMMA and eps == EPS
    assert inputs.shape == targets.shape
    assert tile_rows_max % SUBLANE == 0

    n = inputs.size                       # static Python int
    x = inputs.reshape(-1)
    t = targets.reshape(-1)

    vreg = SUBLANE * LANE                 # 1024 = one f32 vreg
    padded = pl.cdiv(n, vreg) * vreg
    if padded != n:
        # TODO(synk): this pad materializes one extra copy of both streams on
        # the unaligned-n path; a wrapper-side tail reduction or
        # allow_input_fusion could remove it.  Aligned sizes are zero-copy.
        x = jnp.pad(x, (0, padded - n))
        t = jnp.pad(t, (0, padded - n))

    rows = padded // LANE                 # multiple of 8
    x2 = x.reshape(rows, LANE)
    t2 = t.reshape(rows, LANE)

    tile_rows = tile_rows_max if rows >= tile_rows_max else rows
    num_blocks = pl.cdiv(rows, tile_rows)
    block_elems = tile_rows * LANE
    valid_last_elems = n - (num_blocks - 1) * block_elems   # in (0, block_elems]

    if tile_rows > CHUNK_ROWS and tile_rows % CHUNK_ROWS == 0:
        chunk_rows, n_chunks = CHUNK_ROWS, tile_rows // CHUNK_ROWS
    else:
        chunk_rows, n_chunks = tile_rows, 1

    kernel = _make_focal_sum_kernel(
        tile_rows=tile_rows, chunk_rows=chunk_rows, n_chunks=n_chunks,
        num_blocks=num_blocks, valid_last_elems=valid_last_elems,
        binary_targets=binary_targets)

    in_spec = pl.BlockSpec((tile_rows, LANE), lambda i: (i, 0))
    out_spec = pl.BlockSpec((SUBLANE, LANE), lambda i: (0, 0))

    cost = pl.CostEstimate(
        flops=15 * n,
        transcendentals=(1 if binary_targets else 2) * n,
        bytes_accessed=int(x2.size) * x2.dtype.itemsize
        + int(t2.size) * t2.dtype.itemsize
        + SUBLANE * LANE * 4)

    partials = pl.pallas_call(
        kernel,
        out_shape=jax.ShapeDtypeStruct((SUBLANE, LANE), jnp.float32),
        grid_spec=pltpu.PrefetchScalarGridSpec(
            num_scalar_prefetch=0,
            grid=(num_blocks,),
            in_specs=[in_spec, in_spec],
            out_specs=out_spec,
        ),
        compiler_params=pltpu.CompilerParams(
            dimension_semantics=("arbitrary",),
            vmem_limit_bytes=VMEM_LIMIT_BYTES,
        ),
        cost_estimate=cost,
    )(x2, t2)

    # Kernel accumulates the un-negated sum; negation and 1/n folded here.
    return (-partials.sum() / jnp.float32(n)).astype(jnp.float32)


def focal_loss_ref(inputs, targets, gamma=GAMMA, eps=EPS):
    x = jnp.clip(inputs.astype(jnp.float32), eps, 1.0 - eps)
    t = targets.astype(jnp.float32)
    loss = -(t * (1.0 - x) ** gamma * jnp.log(x)
             + (1.0 - t) * x ** gamma * jnp.log(1.0 - x))
    return loss.mean()


if __name__ == "__main__":
    key = jax.random.PRNGKey(0)
    k = jax.random.split(key, 8)

    # Case 1: aligned NCHW shape -> zero-copy path, single block, no masking.
    B, C, H, W = 2, 4, 16, 16
    x1 = jax.random.uniform(k[0], (B, C, H, W), dtype=jnp.float32)
    t1 = (jax.random.uniform(k[1], (B, C, H, W)) > 0.5).astype(jnp.float32)
    out1 = jax.block_until_ready(focal_loss(x1, t1))
    ref1 = jax.block_until_ready(focal_loss_ref(x1, t1))
    assert jnp.allclose(out1, ref1, rtol=1e-5, atol=1e-6), (out1, ref1)

    # Case 1b: binary-target fast path (one log per element).
    out1b = jax.block_until_ready(focal_loss(x1, t1, binary_targets=True))
    assert jnp.allclose(out1b, ref1, rtol=1e-5, atol=1e-6), (out1b, ref1)

    # Case 2: unaligned element count + tiny tile_rows_max to exercise the
    # multi-block resident accumulator and the pl.when-gated masked tail.
    x2 = jax.random.uniform(k[2], (2, 3, 13, 16), dtype=jnp.float32)
    t2 = (jax.random.uniform(k[3], (2, 3, 13, 16)) > 0.5).astype(jnp.float32)
    out2 = jax.block_until_ready(focal_loss(x2, t2, tile_rows_max=8))
    ref2 = jax.block_until_ready(focal_loss_ref(x2, t2))
    assert jnp.allclose(out2, ref2, rtol=1e-5, atol=1e-6), (out2, ref2)

    # Case 3: narrow input dtypes (bf16 probs, int8 targets); kernel casts in VMEM.
    x3 = jax.random.uniform(k[4], (2, 4, 32, 16), dtype=jnp.float32).astype(jnp.bfloat16)
    t3 = (jax.random.uniform(k[5], (2, 4, 32, 16)) > 0.5).astype(jnp.int8)
    out3 = jax.block_until_ready(focal_loss(x3, t3))
    ref3 = jax.block_until_ready(focal_loss_ref(x3, t3))
    assert jnp.allclose(out3, ref3, rtol=1e-4, atol=1e-6), (out3, ref3)

    # Case 4: multi-block at default 4096-row tiles + chunked unrolled loop +
    # masked (padded) tail block.
    x4 = jax.random.uniform(k[6], (1, 1, 4100, 130), dtype=jnp.float32)
    t4 = (jax.random.uniform(k[7], (1, 1, 4100, 130)) > 0.5).astype(jnp.float32)
    out4 = jax.block_until_ready(focal_loss(x4, t4))
    ref4 = jax.block_until_ready(focal_loss_ref(x4, t4))
    assert jnp.allclose(out4, ref4, rtol=1e-4, atol=1e-6), (out4, ref4)

    print("KERNEL_OK")
</pallas_src>

<mosaic_0001>
module attributes {stable_mosaic.version = 11 : i64} {
  func.func @kernel(%arg0: i32, %arg1: memref<16x128xf32, #tpu.memory_space<vmem>>, %arg2: memref<16x128xf32, #tpu.memory_space<vmem>>, %arg3: memref<8x128xf32, #tpu.memory_space<vmem>>) attributes {dimension_semantics = [#tpu.dimension_semantics<arbitrary>], iteration_bounds = array<i64: 1>, scalar_prefetch = 0 : i64, scratch_operands = 0 : i64, tpu.core_type = #tpu.core_type<tc>, window_params = [{transform_indices = @transform_0, window_bounds = array<i64: 16, 128>}, {transform_indices = @transform_1, window_bounds = array<i64: 16, 128>}, {pipeline_mode = #tpu.pipeline_mode<synchronous>, transform_indices = @transform_2, window_bounds = array<i64: 8, 128>}]} {
    %c0_i32 = arith.constant 0 : i32
    %0 = arith.cmpi eq, %arg0, %c0_i32 : i32
    %1 = arith.extui %0 : i1 to i32
    %c0_i32_0 = arith.constant 0 : i32
    %2 = arith.cmpi ne, %1, %c0_i32_0 : i32
    scf.if %2 {
      %cst_11 = arith.constant 0.000000e+00 : f32
      %25 = vector.broadcast %cst_11 : f32 to vector<8x128xf32>
      %c0_12 = arith.constant 0 : index
      %c0_13 = arith.constant 0 : index
      %26 = vector.load %arg3[%c0_12, %c0_13] : memref<8x128xf32, #tpu.memory_space<vmem>>, vector<8x128xf32>
      tpu.vector_store %arg3[%c0_12, %c0_13], %25 {strides = array<i32>} : memref<8x128xf32, #tpu.memory_space<vmem>>, vector<8x128xf32>,
    } else {
    }
    %c0 = arith.constant 0 : index
    %c0_1 = arith.constant 0 : index
    %3 = vector.load %arg1[%c0, %c0_1] : memref<16x128xf32, #tpu.memory_space<vmem>>, vector<16x128xf32>
    %c0_2 = arith.constant 0 : index
    %c0_3 = arith.constant 0 : index
    %4 = vector.load %arg2[%c0_2, %c0_3] : memref<16x128xf32, #tpu.memory_space<vmem>>, vector<16x128xf32>
    %cst = arith.constant 1.000000e-03 : f32
    %cst_4 = arith.constant 9.990000e-01 : f32
    %5 = vector.broadcast %cst : f32 to vector<16x128xf32>
    %6 = arith.maximumf %5, %3 : vector<16x128xf32>
    %7 = vector.broadcast %cst_4 : f32 to vector<16x128xf32>
    %8 = arith.minimumf %7, %6 : vector<16x128xf32>
    %cst_5 = arith.constant 1.000000e+00 : f32
    %9 = vector.broadcast %cst_5 : f32 to vector<16x128xf32>
    %10 = arith.subf %9, %8 : vector<16x128xf32>
    %11 = arith.mulf %10, %10 : vector<16x128xf32>
    %12 = math.log %8 : vector<16x128xf32>
    %13 = arith.mulf %11, %12 : vector<16x128xf32>
    %14 = arith.mulf %8, %8 : vector<16x128xf32>
    %15 = math.log %10 : vector<16x128xf32>
    %16 = arith.mulf %14, %15 : vector<16x128xf32>
    %17 = arith.subf %13, %16 : vector<16x128xf32>
    %18 = arith.mulf %4, %17 : vector<16x128xf32>
    %19 = arith.addf %16, %18 : vector<16x128xf32>
    %c0_6 = arith.constant 0 : index
    %c0_7 = arith.constant 0 : index
    %20 = vector.load %arg3[%c0_6, %c0_7] : memref<8x128xf32, #tpu.memory_space<vmem>>, vector<8x128xf32>
    %21 = vector.shape_cast %19 : vector<16x128xf32> to vector<2x8x128xf32>
    %cst_8 = arith.constant dense<0.000000e+00> : vector<8x128xf32>
    %22 = vector.multi_reduction <add>, %21, %cst_8 [0] : vector<2x8x128xf32> to vector<8x128xf32>
    %23 = arith.addf %20, %22 : vector<8x128xf32>
    %c0_9 = arith.constant 0 : index
    %c0_10 = arith.constant 0 : index
    %24 = vector.load %arg3[%c0_9, %c0_10] : memref<8x128xf32, #tpu.memory_space<vmem>>, vector<8x128xf32>
    tpu.vector_store %arg3[%c0_9, %c0_10], %23 {strides = array<i32>} : memref<8x128xf32, #tpu.memory_space<vmem>>, vector<8x128xf32>,
    return
  }
  func.func @transform_0(%arg0: i32) -> (i32, i32) {
    %c0_i32 = arith.constant 0 : i32
    %c0_i32_0 = arith.constant 0 : i32
    return %arg0, %c0_i32 : i32, i32
  }
  func.func @transform_1(%arg0: i32) -> (i32, i32) {
    %c0_i32 = arith.constant 0 : i32
    %c0_i32_0 = arith.constant 0 : i32
    return %arg0, %c0_i32 : i32, i32
  }
  func.func @transform_2(%arg0: i32) -> (i32, i32) {
    %c0_i32 = arith.constant 0 : i32
    %c0_i32_0 = arith.constant 0 : i32
    %c0_i32_1 = arith.constant 0 : i32
    return %c0_i32, %c0_i32_0 : i32, i32
  }
}

</mosaic_0001>

<llo_original>
// kernel: tpu_custom_call.1
$region0: #{tpu_custom_call.1}
  #allocation0 [shape = 'u32[]', space=smem, size = 0x4, offset = 0x4, fixed_abs, tag = 'smem constant byte address 0x4 - core index']
  #allocation1 [shape = 'u32[72,128]{1,0:T(1,128)}', space=vmem, size = 0x9000, scoped, tag = 'internal scratch']
  %s0 = inlined_call_operand.hbm [shape: f32[16,128], index: 0, kind: input, shape index: {}]
  %s1 = inlined_call_operand.hbm [shape: f32[16,128], index: 1, kind: input, shape index: {}]
  %s2 = inlined_call_operand.hbm [shape: f32[8,128], index: 2, kind: output, shape index: {}]
  %s3 = sld [smem:[#allocation0]]
  $region30: #{tpu_custom_call.1} parent=0
    _
  %s5 = ssub.s32 1, %s3
  %s6 = scalar_select 0, %s5, %s3
  $region1: #{tpu_custom_call.1} parent=0
    #allocation2 [shape = 'u8[8192]{0}', space=vmem, size = 0x2000, scoped, tag = 'input window, operand 0, single buffered']
    #allocation3 [shape = 's32[1]{0}', space=sflag, size = 0x4, scoped, tag = 'scoped memory for tpu_custom_call.1']
    #allocation4 [shape = 's32[1]{0}', space=sflag, size = 0x4, scoped, tag = 'scoped memory for tpu_custom_call.1']
    #allocation5 [shape = 'u8[8192]{0}', space=vmem, size = 0x2000, scoped, tag = 'input window, operand 1, single buffered']
    #allocation6 [shape = 's32[1]{0}', space=sflag, size = 0x4, scoped, tag = 'scoped memory for tpu_custom_call.1']
    #allocation7 [shape = 'u8[4096]{0}', space=vmem, size = 0x1000, scoped, tag = 'output window, operand 0, single buffered']
    %7 = vsyncpa [#allocation3], 0
    %8 = vsyncpa [#allocation6], 0
    %9 = vsyncpa [#allocation4], 0
    // Predicated region
    $region2: #{tpu_custom_call.1} parent=1 // pred_check
      _
    $region3: #{tpu_custom_call.1} parent=1 // pred_check_branch
      %11 = sbr.rel (0) target = $region5
    $region4: #{tpu_custom_call.1} parent=1 // pred_region
      %13 = vsyncadd [#allocation3], 0
      %s14 = sshll.u32 %s0, 4
      %s15 = int_to_ptr.hbm [resolvable:$true] %s14
      %s16 = sshll.u32 [#allocation2], 4
      %s17 = int_to_ptr.vmem [resolvable:$true] %s16
      %22 = dma.hbm_to_vmem [thread:$0]  %s15, 256, %s17, [#allocation3], 128, 128, 8
    $region5: #{tpu_custom_call.1} parent=1 // pred_fallthru
      _
    // Predicated region
    $region6: #{tpu_custom_call.1} parent=1 // pred_check
      _
    $region7: #{tpu_custom_call.1} parent=1 // pred_check_branch
      %24 = sbr.rel (0) target = $region9
    $region8: #{tpu_custom_call.1} parent=1 // pred_region
      %26 = vsyncadd [#allocation6], 0
      %s27 = sshll.u32 %s1, 4
      %s28 = int_to_ptr.hbm [resolvable:$true] %s27
      %s29 = sshll.u32 [#allocation5], 4
      %s30 = int_to_ptr.vmem [resolvable:$true] %s29
      %35 = dma.hbm_to_vmem [thread:$0]  %s28, 256, %s30, [#allocation6], 128, 128, 8
    $region9: #{tpu_custom_call.1} parent=1 // pred_fallthru
      _
    // Predicated region
    $region10: #{tpu_custom_call.1} parent=1 // pred_check
      _
    $region11: #{tpu_custom_call.1} parent=1 // pred_check_branch
      %37 = sbr.rel (0) target = $region13
    $region12: #{tpu_custom_call.1} parent=1 // pred_region
      %39 = dma.done [#allocation3], 256
    $region13: #{tpu_custom_call.1} parent=1 // pred_fallthru
      _
    // Predicated region
    $region14: #{tpu_custom_call.1} parent=1 // pred_check
      _
    $region15: #{tpu_custom_call.1} parent=1 // pred_check_branch
      %41 = sbr.rel (0) target = $region17
    $region16: #{tpu_custom_call.1} parent=1 // pred_region
      %43 = dma.done [#allocation6], 256
    $region17: #{tpu_custom_call.1} parent=1 // pred_fallthru
      _
    %p44 = scmp.eq.s32.totalorder 0, 0
    // Predicated region
    $region18: #{tpu_custom_call.1} parent=1 // pred_check
      %p45 = pneg %p44
    $region19: #{tpu_custom_call.1} parent=1 // pred_check_branch
      %47 = sbr.rel (%p45) target = $region21
    $region20: #{tpu_custom_call.1} parent=1 // pred_region
      %48 = vst [vmem:[#allocation7] sm:$0xff] 0.0
    $region21: #{tpu_custom_call.1} parent=1 // pred_fallthru
      _
    %v49 = vld [vmem:[#allocation2] sm:$0xff]
    %v50 = vld [vmem:[#allocation2 + $0x8] sm:$0xff]
    %v51 = vld [vmem:[#allocation5] sm:$0xff]
    %v52 = vld [vmem:[#allocation5 + $0x8] sm:$0xff]
    %v53 = vmax.f32 %v49, 0.001
    %v54 = vmax.f32 %v50, 0.001
    %v55 = vmin.f32 %v53, 0.999
    %v56 = vmin.f32 %v54, 0.999
    %v57 = vsub.f32 1.0, %v55
    %v58 = vsub.f32 1.0, %v56
    %v59 = vmul.f32 %v57, %v57
    %v60 = vmul.f32 %v58, %v58
    %v61 = vlog2.pop %v55
    %v62 = vmul.f32 %v61, 0.6931472
    %v63 = vlog2.pop %v56
    %v64 = vmul.f32 %v63, 0.6931472
    %v65 = vmul.f32 %v59, %v62
    %v66 = vmul.f32 %v60, %v64
    %v67 = vmul.f32 %v55, %v55
    %v68 = vmul.f32 %v56, %v56
    %v69 = vlog2.pop %v57
    %v70 = vmul.f32 %v69, 0.6931472
    %v71 = vlog2.pop %v58
    %v72 = vmul.f32 %v71, 0.6931472
    %v73 = vmul.f32 %v67, %v70
    %v74 = vmul.f32 %v68, %v72
    %v75 = vsub.f32 %v65, %v73
    %v76 = vsub.f32 %v66, %v74
    %v77 = vmul.f32 %v51, %v75
    %v78 = vmul.f32 %v52, %v76
    %v79 = vadd.f32 %v73, %v77
    %v80 = vadd.f32 %v74, %v78
    %v81 = vld [vmem:[#allocation7] sm:$0xff]
    %v82 = vadd.f32 %v79, %v80
    %v83 = vadd.f32 %v81, %v82
    %84 = vst [vmem:[#allocation7] sm:$0xff] %v83
    // Predicated region
    $region22: #{tpu_custom_call.1} parent=1 // pred_check
      _
    $region23: #{tpu_custom_call.1} parent=1 // pred_check_branch
      %86 = sbr.rel (0) target = $region25
    $region24: #{tpu_custom_call.1} parent=1 // pred_region
      %88 = vsyncadd [#allocation4], 0
      %s90 = sshll.u32 [#allocation7], 4
      %s91 = int_to_ptr.vmem [resolvable:$true] %s90
      %s92 = sshll.u32 %s2, 4
      %s93 = int_to_ptr.hbm [resolvable:$true] %s92
      %95 = dma.vmem_to_hbm [thread:$0]  %s91, 128, %s93, [#allocation4]
    $region25: #{tpu_custom_call.1} parent=1 // pred_fallthru
      _
    // Predicated region
    $region26: #{tpu_custom_call.1} parent=1 // pred_check
      _
    $region27: #{tpu_custom_call.1} parent=1 // pred_check_branch
      %97 = sbr.rel (0) target = $region29
    $region28: #{tpu_custom_call.1} parent=1 // pred_region
      %99 = dma.done [#allocation4], 128
    $region29: #{tpu_custom_call.1} parent=1 // pred_fallthru
      _
    %100 = vsyncpa [#allocation3], 1
    %101 = vsyncpa [#allocation6], 1
    %102 = vsyncpa [#allocation4], 1

</llo_original>
